<compile_context>
chip_gen: v5e
topology: v5e:2x2
jax: 0.10.0
libtpu: 0.0.40
codegen_flags: <defaults>
</compile_context>

<pallas_src>
import jax
import jax.numpy as jnp
from jax import lax
from jax.experimental import pallas as pl
from jax.experimental.pallas import tpu as pltpu


_TRANS_B_DIMS = (((1,), (1,)), ((), ()))   # A @ B^T (flash-attention pattern)


def _make_kernel(epilogue_dtype):
    edt = epilogue_dtype

    def kernel(x_ref,
               w1_ref, t1_ref, w2_ref, t2_ref,
               w3_ref, t3_ref, w4_ref, t4_ref,
               w5_ref, b5_ref,
               o_ref):
        """Forward pass for one (TB, 34) batch tile."""
        h = x_ref[...].astype(jnp.bfloat16)                 # (TB, 34)

        def layer(h_in, w_ref, t_ref):
            # bf16 MXU matmul (BN scale already folded into W) with f32
            # accumulation; shift + ReLU epilogue in `edt`, result bf16 for
            # the next matmul.
            z = jnp.dot(h_in, w_ref[...], preferred_element_type=jnp.float32)
            a = jnp.maximum(z.astype(edt) + t_ref[...].astype(edt), 0.0)
            return a.astype(jnp.bfloat16)

        h = layer(h, w1_ref, t1_ref)                        # (TB, 256)
        h = layer(h, w2_ref, t2_ref)                        # (TB, 128)
        h = layer(h, w3_ref, t3_ref)                        # (TB, 64)
        h = layer(h, w4_ref, t4_ref)                        # (TB, 32)

        # Final 32 -> 1 layer as W5 @ H^T on the MXU: (8,32) x (TB,32)^T ->
        # (8,TB).  The per-row result is lane-dense (batch on lanes), so no
        # (TB,1) column, no relayout, and only ~TB/256 MXU pushes.
        z8 = lax.dot_general(w5_ref[...], h, _TRANS_B_DIMS,
                             preferred_element_type=jnp.float32)   # (8, TB)
        z = z8[0:1, :] + b5_ref[...]                                # (1, TB)

        # Sigmoid on the dense row: exp (EUP) + approx reciprocal (EUP).
        o_ref[0] = pl.reciprocal(1.0 + jnp.exp(-z), approx=True)

    return kernel


def _round_up(n, m):
    return ((n + m - 1) // m) * m


def _bf16_epilogue_default():
    """bf16 VPU epilogue on v6e/v7x; f32 on v5e and older (no bf16 VPU)."""
    try:
        kind = jax.devices()[0].device_kind.lower()
    except Exception:
        return False
    return ("v6" in kind) or ("v7" in kind) or ("7x" in kind)


def mlp_forward(x, params, *, tile_rows=4096, bf16_epilogue=None):
    """x: (..., 17, 2) or (B, 34). Returns (B, 1) float32."""
    if bf16_epilogue is None:
        bf16_epilogue = _bf16_epilogue_default()
    edt = jnp.bfloat16 if bf16_epilogue else jnp.float32

    x2d = x.reshape(-1, 17 * 2).astype(jnp.float32)   # mirrors x.view(-1, 17*2)
    B = x2d.shape[0]

    # Batch tile: multiple of 8 sublanes, capped at the (padded) batch.
    b8 = _round_up(B, 8)
    tb = _round_up(min(int(tile_rows), b8), 8)
    # For large batches keep >= 2 grid steps so both v7x TensorCores get work
    # under dimension_semantics=("parallel",).
    if b8 >= 2048 and b8 // tb < 2:
        tb = _round_up((b8 + 1) // 2, 8)
    b_pad = _round_up(B, tb)
    if b_pad != B:
        x2d = jnp.pad(x2d, ((0, b_pad - B), (0, 0)))
    num_tiles = b_pad // tb

    (w1, t1, w2, t2, w3, t3, w4, t4, w5, b5) = params
    param_list = [w1, t1, w2, t2, w3, t3, w4, t4, w5, b5]

    # Weights / shifts: full-array blocks with a constant index_map -> DMA'd
    # once and VMEM-resident across all batch tiles (~0.15 MB total).
    param_specs = [pl.BlockSpec(p.shape, lambda i: (0, 0)) for p in param_list]

    flops = 2 * b_pad * (34 * 256 + 256 * 128 + 128 * 64 + 64 * 32 + 32)
    param_bytes = sum(int(p.size) * p.dtype.itemsize for p in param_list)
    cost = pl.CostEstimate(
        flops=flops,
        transcendentals=b_pad,
        bytes_accessed=int(x2d.size) * 4 + b_pad * 4 + param_bytes,
    )

    out = pl.pallas_call(
        _make_kernel(edt),
        out_shape=jax.ShapeDtypeStruct((num_tiles, 1, tb), jnp.float32),
        grid=(num_tiles,),
        in_specs=[pl.BlockSpec((tb, 34), lambda i: (i, 0))] + param_specs,
        out_specs=pl.BlockSpec((1, 1, tb), lambda i: (i, 0, 0)),
        compiler_params=pltpu.CompilerParams(
            dimension_semantics=("parallel",),
            vmem_limit_bytes=32 * 1024 * 1024,
        ),
        cost_estimate=cost,
    )(x2d, *param_list)
    return out.reshape(b_pad, 1)[:B]


def _fold_bn(w_pt, b_lin, gamma, beta, mean, var, eps=1e-5):
    """Fold Linear bias + eval-mode BatchNorm1d into (bf16 scaled W^T, f32 shift).

    y = ((x @ W^T + b) - mean) / sqrt(var + eps) * gamma + beta
      = x @ (W^T * scale) + shift
    """
    scale = gamma / jnp.sqrt(var + eps)
    shift = (b_lin - mean) * scale + beta
    w_scaled = (w_pt.T * scale[None, :]).astype(jnp.bfloat16)   # (in, out)
    return w_scaled, shift[None, :].astype(jnp.float32)


def init_params(key):
    """Deterministic synthetic parameters (PyTorch-Linear-style uniform init)."""
    dims = [(34, 256), (256, 128), (128, 64), (64, 32), (32, 1)]
    keys = jax.random.split(key, 5 * 2 + 4 * 4)
    k = iter(keys)

    def linear(fan_in, fan_out):
        bound = 1.0 / jnp.sqrt(fan_in)
        w = jax.random.uniform(next(k), (fan_out, fan_in), jnp.float32,
                               -bound, bound)      # PyTorch layout (out, in)
        b = jax.random.uniform(next(k), (fan_out,), jnp.float32, -bound, bound)
        return w, b

    def bn(n):
        gamma = 1.0 + 0.1 * jax.random.normal(next(k), (n,), jnp.float32)
        beta = 0.1 * jax.random.normal(next(k), (n,), jnp.float32)
        mean = 0.1 * jax.random.normal(next(k), (n,), jnp.float32)
        var = jnp.abs(jax.random.normal(next(k), (n,), jnp.float32)) + 0.5
        return gamma, beta, mean, var

    params = []
    for (fi, fo) in dims[:4]:
        w, b = linear(fi, fo)
        g, bt, m, v = bn(fo)
        params.extend(_fold_bn(w, b, g, bt, m, v))
    # Final layer: plain Linear + sigmoid.  Weight row replicated to 8
    # sublanes so the in-kernel (8,32) x (TB,32)^T MXU matmul uses a full
    # sublane tile; bias kept f32.
    w5, b5 = linear(*dims[4])                       # w5: (1, 32), b5: (1,)
    params.append(jnp.broadcast_to(w5, (8, 32)).astype(jnp.bfloat16))
    params.append(b5.reshape(1, 1).astype(jnp.float32))
    return tuple(params)


def _reference(x, params):
    """Pure-JAX (f32) reference of the same folded computation."""
    h = x.reshape(-1, 34).astype(jnp.float32)
    (w1, t1, w2, t2, w3, t3, w4, t4, w5, b5) = params
    for w, t in ((w1, t1), (w2, t2), (w3, t3), (w4, t4)):
        h = jnp.maximum(h @ w.astype(jnp.float32) + t, 0.0)
    z = h @ w5[0].astype(jnp.float32)[:, None] + b5
    return jax.nn.sigmoid(z)


if __name__ == "__main__":
    key = jax.random.PRNGKey(0)
    kp, kx, kx2 = jax.random.split(key, 3)
    params = init_params(kp)

    # Small input consistent with the module: batch=8 samples of 17 (x,y) pairs.
    x = jax.random.normal(kx, (8, 17, 2), jnp.float32)
    out = jax.block_until_ready(mlp_forward(x, params))
    ref = _reference(x, params)
    assert out.shape == (8, 1)
    assert jnp.allclose(out, ref, atol=2e-2, rtol=2e-2)

    # Exercise the multi-tile grid + padded-tail path (still tiny).
    x2 = jax.random.normal(kx2, (40, 17, 2), jnp.float32)
    out2 = jax.block_until_ready(mlp_forward(x2, params, tile_rows=16))
    ref2 = _reference(x2, params)
    assert out2.shape == (40, 1)
    assert jnp.allclose(out2, ref2, atol=2e-2, rtol=2e-2)

    print("KERNEL_OK")
</pallas_src>

<mosaic_0001>
module attributes {stable_mosaic.version = 11 : i64} {
  func.func @kernel(%arg0: i32, %arg1: memref<8x34xf32, #tpu.memory_space<vmem>>, %arg2: memref<34x256xbf16, #tpu.memory_space<vmem>>, %arg3: memref<1x256xf32, #tpu.memory_space<vmem>>, %arg4: memref<256x128xbf16, #tpu.memory_space<vmem>>, %arg5: memref<1x128xf32, #tpu.memory_space<vmem>>, %arg6: memref<128x64xbf16, #tpu.memory_space<vmem>>, %arg7: memref<1x64xf32, #tpu.memory_space<vmem>>, %arg8: memref<64x32xbf16, #tpu.memory_space<vmem>>, %arg9: memref<1x32xf32, #tpu.memory_space<vmem>>, %arg10: memref<8x32xbf16, #tpu.memory_space<vmem>>, %arg11: memref<1x1xf32, #tpu.memory_space<vmem>>, %arg12: memref<1x1x8xf32, #tpu.memory_space<vmem>>) attributes {dimension_semantics = [#tpu.dimension_semantics<parallel>], iteration_bounds = array<i64: 1>, scalar_prefetch = 0 : i64, scratch_operands = 0 : i64, tpu.core_type = #tpu.core_type<tc>, window_params = [{transform_indices = @transform_0, window_bounds = array<i64: 8, 34>}, {pipeline_mode = #tpu.pipeline_mode<synchronous>, transform_indices = @transform_1, window_bounds = array<i64: 34, 256>}, {pipeline_mode = #tpu.pipeline_mode<synchronous>, transform_indices = @transform_2, window_bounds = array<i64: 1, 256>}, {pipeline_mode = #tpu.pipeline_mode<synchronous>, transform_indices = @transform_3, window_bounds = array<i64: 256, 128>}, {pipeline_mode = #tpu.pipeline_mode<synchronous>, transform_indices = @transform_4, window_bounds = array<i64: 1, 128>}, {pipeline_mode = #tpu.pipeline_mode<synchronous>, transform_indices = @transform_5, window_bounds = array<i64: 128, 64>}, {pipeline_mode = #tpu.pipeline_mode<synchronous>, transform_indices = @transform_6, window_bounds = array<i64: 1, 64>}, {pipeline_mode = #tpu.pipeline_mode<synchronous>, transform_indices = @transform_7, window_bounds = array<i64: 64, 32>}, {pipeline_mode = #tpu.pipeline_mode<synchronous>, transform_indices = @transform_8, window_bounds = array<i64: 1, 32>}, {pipeline_mode = #tpu.pipeline_mode<synchronous>, transform_indices = @transform_9, window_bounds = array<i64: 8, 32>}, {pipeline_mode = #tpu.pipeline_mode<synchronous>, transform_indices = @transform_10, window_bounds = array<i64: 1, 1>}, {transform_indices = @transform_11, window_bounds = array<i64: 1, 1, 8>}]} {
    %c0 = arith.constant 0 : index
    %c0_0 = arith.constant 0 : index
    %0 = vector.load %arg1[%c0, %c0_0] : memref<8x34xf32, #tpu.memory_space<vmem>>, vector<8x34xf32>
    %1 = arith.truncf %0 : vector<8x34xf32> to vector<8x34xbf16>
    %c0_1 = arith.constant 0 : index
    %c0_2 = arith.constant 0 : index
    %2 = vector.load %arg2[%c0_1, %c0_2] : memref<34x256xbf16, #tpu.memory_space<vmem>>, vector<34x256xbf16>
    %cst = arith.constant dense<0.000000e+00> : vector<8x256xf32>
    %3 = tpu.matmul %1, %2, %cst {dimension_numbers = #tpu.dot_dimension_numbers<[1], [0], [0], [1], [0, 0, 1, 1], [], []>} : vector<8x34xbf16>, vector<34x256xbf16>, vector<8x256xf32> -> vector<8x256xf32>
    %c0_3 = arith.constant 0 : index
    %c0_4 = arith.constant 0 : index
    %4 = vector.load %arg3[%c0_3, %c0_4] : memref<1x256xf32, #tpu.memory_space<vmem>>, vector<1x256xf32>
    %5 = vector.broadcast %4 : vector<1x256xf32> to vector<8x256xf32>
    %6 = arith.addf %3, %5 : vector<8x256xf32>
    %cst_5 = arith.constant 0.000000e+00 : f32
    %7 = vector.broadcast %cst_5 : f32 to vector<8x256xf32>
    %8 = arith.maximumf %6, %7 : vector<8x256xf32>
    %9 = arith.truncf %8 : vector<8x256xf32> to vector<8x256xbf16>
    %c0_6 = arith.constant 0 : index
    %c0_7 = arith.constant 0 : index
    %10 = vector.load %arg4[%c0_6, %c0_7] : memref<256x128xbf16, #tpu.memory_space<vmem>>, vector<256x128xbf16>
    %cst_8 = arith.constant dense<0.000000e+00> : vector<8x128xf32>
    %11 = tpu.matmul %9, %10, %cst_8 {dimension_numbers = #tpu.dot_dimension_numbers<[1], [0], [0], [1], [0, 0, 1, 1], [], []>} : vector<8x256xbf16>, vector<256x128xbf16>, vector<8x128xf32> -> vector<8x128xf32>
    %c0_9 = arith.constant 0 : index
    %c0_10 = arith.constant 0 : index
    %12 = vector.load %arg5[%c0_9, %c0_10] : memref<1x128xf32, #tpu.memory_space<vmem>>, vector<1x128xf32>
    %13 = vector.broadcast %12 : vector<1x128xf32> to vector<8x128xf32>
    %14 = arith.addf %11, %13 : vector<8x128xf32>
    %cst_11 = arith.constant 0.000000e+00 : f32
    %15 = vector.broadcast %cst_11 : f32 to vector<8x128xf32>
    %16 = arith.maximumf %14, %15 : vector<8x128xf32>
    %17 = arith.truncf %16 : vector<8x128xf32> to vector<8x128xbf16>
    %c0_12 = arith.constant 0 : index
    %c0_13 = arith.constant 0 : index
    %18 = vector.load %arg6[%c0_12, %c0_13] : memref<128x64xbf16, #tpu.memory_space<vmem>>, vector<128x64xbf16>
    %cst_14 = arith.constant dense<0.000000e+00> : vector<8x64xf32>
    %19 = tpu.matmul %17, %18, %cst_14 {dimension_numbers = #tpu.dot_dimension_numbers<[1], [0], [0], [1], [0, 0, 1, 1], [], []>} : vector<8x128xbf16>, vector<128x64xbf16>, vector<8x64xf32> -> vector<8x64xf32>
    %c0_15 = arith.constant 0 : index
    %c0_16 = arith.constant 0 : index
    %20 = vector.load %arg7[%c0_15, %c0_16] : memref<1x64xf32, #tpu.memory_space<vmem>>, vector<1x64xf32>
    %21 = vector.broadcast %20 : vector<1x64xf32> to vector<8x64xf32>
    %22 = arith.addf %19, %21 : vector<8x64xf32>
    %cst_17 = arith.constant 0.000000e+00 : f32
    %23 = vector.broadcast %cst_17 : f32 to vector<8x64xf32>
    %24 = arith.maximumf %22, %23 : vector<8x64xf32>
    %25 = arith.truncf %24 : vector<8x64xf32> to vector<8x64xbf16>
    %c0_18 = arith.constant 0 : index
    %c0_19 = arith.constant 0 : index
    %26 = vector.load %arg8[%c0_18, %c0_19] : memref<64x32xbf16, #tpu.memory_space<vmem>>, vector<64x32xbf16>
    %cst_20 = arith.constant dense<0.000000e+00> : vector<8x32xf32>
    %27 = tpu.matmul %25, %26, %cst_20 {dimension_numbers = #tpu.dot_dimension_numbers<[1], [0], [0], [1], [0, 0, 1, 1], [], []>} : vector<8x64xbf16>, vector<64x32xbf16>, vector<8x32xf32> -> vector<8x32xf32>
    %c0_21 = arith.constant 0 : index
    %c0_22 = arith.constant 0 : index
    %28 = vector.load %arg9[%c0_21, %c0_22] : memref<1x32xf32, #tpu.memory_space<vmem>>, vector<1x32xf32>
    %29 = vector.broadcast %28 : vector<1x32xf32> to vector<8x32xf32>
    %30 = arith.addf %27, %29 : vector<8x32xf32>
    %cst_23 = arith.constant 0.000000e+00 : f32
    %31 = vector.broadcast %cst_23 : f32 to vector<8x32xf32>
    %32 = arith.maximumf %30, %31 : vector<8x32xf32>
    %33 = arith.truncf %32 : vector<8x32xf32> to vector<8x32xbf16>
    %c0_24 = arith.constant 0 : index
    %c0_25 = arith.constant 0 : index
    %34 = vector.load %arg10[%c0_24, %c0_25] : memref<8x32xbf16, #tpu.memory_space<vmem>>, vector<8x32xbf16>
    %cst_26 = arith.constant dense<0.000000e+00> : vector<8x8xf32>
    %35 = tpu.matmul %34, %33, %cst_26 {dimension_numbers = #tpu.dot_dimension_numbers<[1], [1], [0], [0], [0, 0, 1, 0], [], []>} : vector<8x32xbf16>, vector<8x32xbf16>, vector<8x8xf32> -> vector<8x8xf32>
    %36 = vector.extract_strided_slice %35 {offsets = [0, 0], sizes = [1, 8], strides = [1, 1]} : vector<8x8xf32> to vector<1x8xf32>
    %c0_27 = arith.constant 0 : index
    %c0_28 = arith.constant 0 : index
    %37 = vector.load %arg11[%c0_27, %c0_28] : memref<1x1xf32, #tpu.memory_space<vmem>>, vector<1x1xf32>
    %38 = vector.broadcast %37 : vector<1x1xf32> to vector<1x8xf32>
    %39 = arith.addf %36, %38 : vector<1x8xf32>
    %cst_29 = arith.constant 0.000000e+00 : f32
    %40 = vector.broadcast %cst_29 : f32 to vector<1x8xf32>
    %41 = arith.subf %40, %39 : vector<1x8xf32>
    %42 = math.exp %41 : vector<1x8xf32>
    %cst_30 = arith.constant 1.000000e+00 : f32
    %43 = vector.broadcast %cst_30 : f32 to vector<1x8xf32>
    %44 = arith.addf %43, %42 : vector<1x8xf32>
    %45 = tpu.reciprocal %44 {approx = true} : vector<1x8xf32> -> vector<1x8xf32>
    %c0_31 = arith.constant 0 : index
    %c0_32 = arith.constant 0 : index
    %c0_33 = arith.constant 0 : index
    %46 = vector.load %arg12[%c0_31, %c0_32, %c0_33] : memref<1x1x8xf32, #tpu.memory_space<vmem>>, vector<1x1x8xf32>
    %47 = vector.shape_cast %46 : vector<1x1x8xf32> to vector<1x8xf32>
    %48 = vector.shape_cast %45 : vector<1x8xf32> to vector<1x1x8xf32>
    tpu.vector_store %arg12[%c0_31, %c0_32, %c0_33], %48 {strides = array<i32>} : memref<1x1x8xf32, #tpu.memory_space<vmem>>, vector<1x1x8xf32>,
    return
  }
  func.func @transform_0(%arg0: i32) -> (i32, i32) {
    %c0_i32 = arith.constant 0 : i32
    %c0_i32_0 = arith.constant 0 : i32
    return %arg0, %c0_i32 : i32, i32
  }
  func.func @transform_1(%arg0: i32) -> (i32, i32) {
    %c0_i32 = arith.constant 0 : i32
    %c0_i32_0 = arith.constant 0 : i32
    %c0_i32_1 = arith.constant 0 : i32
    return %c0_i32, %c0_i32_0 : i32, i32
  }
  func.func @transform_2(%arg0: i32) -> (i32, i32) {
    %c0_i32 = arith.constant 0 : i32
    %c0_i32_0 = arith.constant 0 : i32
    %c0_i32_1 = arith.constant 0 : i32
    return %c0_i32, %c0_i32_0 : i32, i32
  }
  func.func @transform_3(%arg0: i32) -> (i32, i32) {
    %c0_i32 = arith.constant 0 : i32
    %c0_i32_0 = arith.constant 0 : i32
    %c0_i32_1 = arith.constant 0 : i32
    return %c0_i32, %c0_i32_0 : i32, i32
  }
  func.func @transform_4(%arg0: i32) -> (i32, i32) {
    %c0_i32 = arith.constant 0 : i32
    %c0_i32_0 = arith.constant 0 : i32
    %c0_i32_1 = arith.constant 0 : i32
    return %c0_i32, %c0_i32_0 : i32, i32
  }
  func.func @transform_5(%arg0: i32) -> (i32, i32) {
    %c0_i32 = arith.constant 0 : i32
    %c0_i32_0 = arith.constant 0 : i32
    %c0_i32_1 = arith.constant 0 : i32
    return %c0_i32, %c0_i32_0 : i32, i32
  }
  func.func @transform_6(%arg0: i32) -> (i32, i32) {
    %c0_i32 = arith.constant 0 : i32
    %c0_i32_0 = arith.constant 0 : i32
    %c0_i32_1 = arith.constant 0 : i32
    return %c0_i32, %c0_i32_0 : i32, i32
  }
  func.func @transform_7(%arg0: i32) -> (i32, i32) {
    %c0_i32 = arith.constant 0 : i32
    %c0_i32_0 = arith.constant 0 : i32
    %c0_i32_1 = arith.constant 0 : i32
    return %c0_i32, %c0_i32_0 : i32, i32
  }
  func.func @transform_8(%arg0: i32) -> (i32, i32) {
    %c0_i32 = arith.constant 0 : i32
    %c0_i32_0 = arith.constant 0 : i32
    %c0_i32_1 = arith.constant 0 : i32
    return %c0_i32, %c0_i32_0 : i32, i32
  }
  func.func @transform_9(%arg0: i32) -> (i32, i32) {
    %c0_i32 = arith.constant 0 : i32
    %c0_i32_0 = arith.constant 0 : i32
    %c0_i32_1 = arith.constant 0 : i32
    return %c0_i32, %c0_i32_0 : i32, i32
  }
  func.func @transform_10(%arg0: i32) -> (i32, i32) {
    %c0_i32 = arith.constant 0 : i32
    %c0_i32_0 = arith.constant 0 : i32
    %c0_i32_1 = arith.constant 0 : i32
    return %c0_i32, %c0_i32_0 : i32, i32
  }
  func.func @transform_11(%arg0: i32) -> (i32, i32, i32) {
    %c0_i32 = arith.constant 0 : i32
    %c0_i32_0 = arith.constant 0 : i32
    %c0_i32_1 = arith.constant 0 : i32
    return %arg0, %c0_i32, %c0_i32_0 : i32, i32, i32
  }
}

</mosaic_0001>

<llo_original>
// kernel: tpu_custom_call.1
$region0: #{tpu_custom_call.1}
  #allocation0 [shape = 'u32[]', space=smem, size = 0x4, offset = 0x4, fixed_abs, tag = 'smem constant byte address 0x4 - core index']
  #allocation1 [shape = 'u32[72,128]{1,0:T(1,128)}', space=vmem, size = 0x9000, scoped, tag = 'internal scratch']
  #allocation2 [shape = 'f32[1,1]{1,0:T(1,128)S(1)}', space=vmem, size = 0x200, scoped, tag = 'scoped memory for tpu_custom_call.1']
  %s0 = inlined_call_operand.vmem [shape: f32[8,34], index: 0, kind: input, shape index: {}]
  %s1 = inlined_call_operand.hbm [shape: bf16[34,256], index: 1, kind: input, shape index: {}]
  %s2 = inlined_call_operand.vmem [shape: f32[1,256], index: 2, kind: input, shape index: {}]
  %s3 = inlined_call_operand.vmem [shape: bf16[256,128], index: 3, kind: input, shape index: {}]
  %s4 = inlined_call_operand.vmem [shape: f32[1,128], index: 4, kind: input, shape index: {}]
  %s5 = inlined_call_operand.vmem [shape: bf16[128,64], index: 5, kind: input, shape index: {}]
  %s6 = inlined_call_operand.vmem [shape: f32[1,64], index: 6, kind: input, shape index: {}]
  %s7 = inlined_call_operand.vmem [shape: bf16[64,32], index: 7, kind: input, shape index: {}]
  %s8 = inlined_call_operand.vmem [shape: f32[1,32], index: 8, kind: input, shape index: {}]
  %s9 = inlined_call_operand.vmem [shape: bf16[8,32], index: 9, kind: input, shape index: {}]
  %s10 = inlined_call_operand.<no memory space> [shape: f32[1,1], index: 10, kind: input, shape index: {}]
  %s11 = inlined_call_operand.hbm [shape: f32[1,1,8], index: 11, kind: output, shape index: {}]
  %s12 = sld [smem:[#allocation0]]
  $region58: #{tpu_custom_call.1} parent=0
    _
  %s14 = ssub.s32 1, %s12
  %s15 = scalar_select 0, %s14, %s12
  %v16 = vstv %s10
  %17 = vst [vmem:[#allocation2] sm:$0x1] %v16
  $region1: #{tpu_custom_call.1} parent=0
    #allocation3 [shape = 'u8[20480]{0}', space=vmem, size = 0x5000, scoped, tag = 'input window, operand 1, single buffered']
    #allocation4 [shape = 's32[1]{0}', space=sflag, size = 0x4, scoped, tag = 'scoped memory for tpu_custom_call.1']
    #allocation5 [shape = 's32[1]{0}', space=sflag, size = 0x4, scoped, tag = 'scoped memory for tpu_custom_call.1']
    #allocation6 [shape = 'u8[512]{0}', space=vmem, size = 0x400, scoped, tag = 'output window, operand 0, single buffered']
    %18 = vsyncpa [#allocation4], 0
    %19 = vsyncpa [#allocation5], 0
    // Predicated region
    $region2: #{tpu_custom_call.1} parent=1 // pred_check
      _
    $region3: #{tpu_custom_call.1} parent=1 // pred_check_branch
      %21 = sbr.rel (0) target = $region5
    $region4: #{tpu_custom_call.1} parent=1 // pred_region
      _
    $region5: #{tpu_custom_call.1} parent=1 // pred_fallthru
      _
    // Predicated region
    $region6: #{tpu_custom_call.1} parent=1 // pred_check
      _
    $region7: #{tpu_custom_call.1} parent=1 // pred_check_branch
      %23 = sbr.rel (0) target = $region9
    $region8: #{tpu_custom_call.1} parent=1 // pred_region
      %25 = vsyncadd [#allocation4], 0
      %s26 = sshll.u32 %s1, 4
      %s27 = int_to_ptr.hbm [resolvable:$true] %s26
      %s28 = sshll.u32 [#allocation3], 4
      %s29 = int_to_ptr.vmem [resolvable:$true] %s28
      %34 = dma.hbm_to_vmem [thread:$0]  %s27, 640, %s29, [#allocation4], 128, 128, 8
    $region9: #{tpu_custom_call.1} parent=1 // pred_fallthru
      _
    // Predicated region
    $region10: #{tpu_custom_call.1} parent=1 // pred_check
      _
    $region11: #{tpu_custom_call.1} parent=1 // pred_check_branch
      %36 = sbr.rel (0) target = $region13
    $region12: #{tpu_custom_call.1} parent=1 // pred_region
      _
    $region13: #{tpu_custom_call.1} parent=1 // pred_fallthru
      _
    // Predicated region
    $region14: #{tpu_custom_call.1} parent=1 // pred_check
      _
    $region15: #{tpu_custom_call.1} parent=1 // pred_check_branch
      %38 = sbr.rel (0) target = $region17
    $region16: #{tpu_custom_call.1} parent=1 // pred_region
      _
    $region17: #{tpu_custom_call.1} parent=1 // pred_fallthru
      _
    // Predicated region
    $region18: #{tpu_custom_call.1} parent=1 // pred_check
      _
    $region19: #{tpu_custom_call.1} parent=1 // pred_check_branch
      %40 = sbr.rel (0) target = $region21
    $region20: #{tpu_custom_call.1} parent=1 // pred_region
      _
    $region21: #{tpu_custom_call.1} parent=1 // pred_fallthru
      _
    // Predicated region
    $region22: #{tpu_custom_call.1} parent=1 // pred_check
      _
    $region23: #{tpu_custom_call.1} parent=1 // pred_check_branch
      %42 = sbr.rel (0) target = $region25
    $region24: #{tpu_custom_call.1} parent=1 // pred_region
      _
    $region25: #{tpu_custom_call.1} parent=1 // pred_fallthru
      _
    // Predicated region
    $region26: #{tpu_custom_call.1} parent=1 // pred_check
      _
    $region27: #{tpu_custom_call.1} parent=1 // pred_check_branch
      %44 = sbr.rel (0) target = $region29
    $region28: #{tpu_custom_call.1} parent=1 // pred_region
      _
    $region29: #{tpu_custom_call.1} parent=1 // pred_fallthru
      _
    // Predicated region
    $region30: #{tpu_custom_call.1} parent=1 // pred_check
      _
    $region31: #{tpu_custom_call.1} parent=1 // pred_check_branch
      %46 = sbr.rel (0) target = $region33
    $region32: #{tpu_custom_call.1} parent=1 // pred_region
      _
    $region33: #{tpu_custom_call.1} parent=1 // pred_fallthru
      _
    // Predicated region
    $region34: #{tpu_custom_call.1} parent=1 // pred_check
      _
    $region35: #{tpu_custom_call.1} parent=1 // pred_check_branch
      %48 = sbr.rel (0) target = $region37
    $region36: #{tpu_custom_call.1} parent=1 // pred_region
      _
    $region37: #{tpu_custom_call.1} parent=1 // pred_fallthru
      _
    // Predicated region
    $region38: #{tpu_custom_call.1} parent=1 // pred_check
      _
    $region39: #{tpu_custom_call.1} parent=1 // pred_check_branch
      %50 = sbr.rel (0) target = $region41
    $region40: #{tpu_custom_call.1} parent=1 // pred_region
      _
    $region41: #{tpu_custom_call.1} parent=1 // pred_fallthru
      _
    // Predicated region
    $region42: #{tpu_custom_call.1} parent=1 // pred_check
      _
    $region43: #{tpu_custom_call.1} parent=1 // pred_check_branch
      %52 = sbr.rel (0) target = $region45
    $region44: #{tpu_custom_call.1} parent=1 // pred_region
      _
    $region45: #{tpu_custom_call.1} parent=1 // pred_fallthru
      _
    // Predicated region
    $region46: #{tpu_custom_call.1} parent=1 // pred_check
      _
    $region47: #{tpu_custom_call.1} parent=1 // pred_check_branch
      %54 = sbr.rel (0) target = $region49
    $region48: #{tpu_custom_call.1} parent=1 // pred_region
      %56 = dma.done [#allocation4], 640
    $region49: #{tpu_custom_call.1} parent=1 // pred_fallthru
      _
    %v58 = vld [vmem:[%s0] sm:$0xff]
    %v59 = vpack.c.bf16 %v58, %v58
    %v60 = vld [vmem:[#allocation3] sm:$0xff]
    %v61 = vld [vmem:[#allocation3 + $0x8] sm:$0xff]
    %v62 = vld [vmem:[#allocation3 + $0x10] sm:$0xff]
    %v63 = vld [vmem:[#allocation3 + $0x18] sm:$0xff]
    %v64 = vld [vmem:[#allocation3 + $0x20] sm:$0x11]
    %v65 = vld [vmem:[%s2] sm:$0x3]
    %v67 = vperm.slane %v65, 0
    %v68 = vperm.slane %v65, 1
    %v76 = vunpack.c.l.b16 %v60
    %v77 = vunpack.c.h.b16 %v60
    %v78 = vunpack.c.l.b16 %v61
    %v79 = vunpack.c.h.b16 %v61
    %v80 = vunpack.c.l.b16 %v62
    %v81 = vunpack.c.h.b16 %v62
    %v82 = vunpack.c.l.b16 %v63
    %v83 = vunpack.c.h.b16 %v63
    %v84 = vunpack.c.l.b16 %v64
    %v85 = vunpack.c.h.b16 %v64
    %v86 = vpack.c.b16 %v78, %v76
    %v87 = vpack.c.b16 %v79, %v77
    %v88 = vpack.c.b16 %v82, %v80
    %v89 = vpack.c.b16 %v83, %v81
    %v90 = vpack.c.b16 %v84, %v84
    %v91 = vpack.c.b16 %v85, %v85
    %vm96 = vcmask 277504
    %v98 = vsel %vm96, %v59, 0
    %vm100 = vcmask 1040384
    %v102 = vsel %vm100, %v90, 0
    %v105 = vsel %vm100, %v91, 0
    %107 = vmatpush.bf16.msra.mxu0 0
    %108 = vmatpush.bf16.msra.mxu0 0
    %109 = vmatpush.bf16.msra.mxu0 0
    %110 = vmatpush.bf16.msra.mxu0 0
    %111 = vmatpush.bf16.msra.mxu0 0
    %112 = vmatpush.bf16.msra.mxu0 %v102
    %113 = vmatpush.bf16.msra.mxu0 %v88
    %114 = vmatpush.bf16.msra.mxu0 %v86
    %115 = vmatmul.bf16.gmra.mxu0 %v98
    %v116 = vpop.f32.mrf.mxu0
    %v117 = vadd.f32 %v67, %v116
    %v118 = vpop.f32.mrf.mxu0
    %119 = vdwg.mxu0
    %120 = vmatpush.bf16.msra.mxu0 0
    %121 = vmatpush.bf16.msra.mxu0 0
    %122 = vmatpush.bf16.msra.mxu0 0
    %123 = vmatpush.bf16.msra.mxu0 0
    %124 = vmatpush.bf16.msra.mxu0 0
    %125 = vmatpush.bf16.msra.mxu0 %v105
    %126 = vmatpush.bf16.msra.mxu0 %v89
    %127 = vmatpush.bf16.msra.mxu0 %v87
    %128 = vmatmul.bf16.gmra.mxu0 %v98
    %v129 = vpop.f32.mrf.mxu0
    %v130 = vadd.f32 %v68, %v129
    %v131 = vpop.f32.mrf.mxu0
    %132 = vdwg.mxu0
    %v133 = vmax.f32 %v117, 0.0
    %v134 = vmax.f32 %v130, 0.0
    %v135 = vpack.c.bf16 %v133, %v133
    %v136 = vpack.c.bf16 %v134, %v134
    %v137 = vld [vmem:[%s3] sm:$0xf]
    %v138 = vld [vmem:[%s3 + $0x4] sm:$0xf]
    %v139 = vld [vmem:[%s3 + $0x8] sm:$0xf]
    %v140 = vld [vmem:[%s3 + $0xc] sm:$0xf]
    %v141 = vld [vmem:[%s3 + $0x10] sm:$0xf]
    %v142 = vld [vmem:[%s3 + $0x14] sm:$0xf]
    %v143 = vld [vmem:[%s3 + $0x18] sm:$0xf]
    %v144 = vld [vmem:[%s3 + $0x1c] sm:$0xf]
    %v145 = vld [vmem:[%s3 + $0x20] sm:$0xf]
    %v146 = vld [vmem:[%s3 + $0x24] sm:$0xf]
    %v147 = vld [vmem:[%s3 + $0x28] sm:$0xf]
    %v148 = vld [vmem:[%s3 + $0x2c] sm:$0xf]
    %v149 = vld [vmem:[%s3 + $0x30] sm:$0xf]
    %v150 = vld [vmem:[%s3 + $0x34] sm:$0xf]
    %v151 = vld [vmem:[%s3 + $0x38] sm:$0xf]
    %v152 = vld [vmem:[%s3 + $0x3c] sm:$0xf]
    %v153 = vld [vmem:[%s3 + $0x40] sm:$0xf]
    %v154 = vld [vmem:[%s3 + $0x44] sm:$0xf]
    %v155 = vld [vmem:[%s3 + $0x48] sm:$0xf]
    %v156 = vld [vmem:[%s3 + $0x4c] sm:$0xf]
    %v157 = vld [vmem:[%s3 + $0x50] sm:$0xf]
    %v158 = vld [vmem:[%s3 + $0x54] sm:$0xf]
    %v159 = vld [vmem:[%s3 + $0x58] sm:$0xf]
    %v160 = vld [vmem:[%s3 + $0x5c] sm:$0xf]
    %v161 = vld [vmem:[%s3 + $0x60] sm:$0xf]
    %v162 = vld [vmem:[%s3 + $0x64] sm:$0xf]
    %v163 = vld [vmem:[%s3 + $0x68] sm:$0xf]
    %v164 = vld [vmem:[%s3 + $0x6c] sm:$0xf]
    %v165 = vld [vmem:[%s3 + $0x70] sm:$0xf]
    %v166 = vld [vmem:[%s3 + $0x74] sm:$0xf]
    %v167 = vld [vmem:[%s3 + $0x78] sm:$0xf]
    %v168 = vld [vmem:[%s3 + $0x7c] sm:$0xf]
    %v169 = vld [vmem:[%s4] sm:$0x1]
    %v171 = vperm.slane %v169, 0
    %v205 = vunpack.c.l.b16 %v137
    %v206 = vunpack.c.l.b16 %v138
    %v207 = vunpack.c.l.b16 %v139
    %v208 = vunpack.c.l.b16 %v140
    %v209 = vunpack.c.l.b16 %v141
    %v210 = vunpack.c.l.b16 %v142
    %v211 = vunpack.c.l.b16 %v143
    %v212 = vunpack.c.l.b16 %v144
    %v213 = vunpack.c.l.b16 %v145
    %v214 = vunpack.c.l.b16 %v146
    %v215 = vunpack.c.l.b16 %v147
    %v216 = vunpack.c.l.b16 %v148
    %v217 = vunpack.c.l.b16 %v149
    %v218 = vunpack.c.l.b16 %v150
    %v219 = vunpack.c.l.b16 %v151
    %v220 = vunpack.c.l.b16 %v152
    %v221 = vunpack.c.l.b16 %v153
    %v222 = vunpack.c.l.b16 %v154
    %v223 = vunpack.c.l.b16 %v155
    %v224 = vunpack.c.l.b16 %v156
    %v225 = vunpack.c.l.b16 %v157
    %v226 = vunpack.c.l.b16 %v158
    %v227 = vunpack.c.l.b16 %v159
    %v228 = vunpack.c.l.b16 %v160
    %v229 = vunpack.c.l.b16 %v161
    %v230 = vunpack.c.l.b16 %v162
    %v231 = vunpack.c.l.b16 %v163
    %v232 = vunpack.c.l.b16 %v164
    %v233 = vunpack.c.l.b16 %v165
    %v234 = vunpack.c.l.b16 %v166
    %v235 = vunpack.c.l.b16 %v167
    %v236 = vunpack.c.l.b16 %v168
    %v237 = vpack.c.b16 %v206, %v205
    %v238 = vpack.c.b16 %v208, %v207
    %v239 = vpack.c.b16 %v210, %v209
    %v240 = vpack.c.b16 %v212, %v211
    %v241 = vpack.c.b16 %v214, %v213
    %v242 = vpack.c.b16 %v216, %v215
    %v243 = vpack.c.b16 %v218, %v217
    %v244 = vpack.c.b16 %v220, %v219
    %v245 = vpack.c.b16 %v222, %v221
    %v246 = vpack.c.b16 %v224, %v223
    %v247 = vpack.c.b16 %v226, %v225
    %v248 = vpack.c.b16 %v228, %v227
    %v249 = vpack.c.b16 %v230, %v229
    %v250 = vpack.c.b16 %v232, %v231
    %v251 = vpack.c.b16 %v234, %v233
    %v252 = vpack.c.b16 %v236, %v235
    %269 = vmatpush.bf16.msra.mxu0 %v244
    %270 = vmatpush.bf16.msra.mxu0 %v243
    %271 = vmatpush.bf16.msra.mxu0 %v242
    %272 = vmatpush.bf16.msra.mxu0 %v241
    %273 = vmatpush.bf16.msra.mxu0 %v240
    %274 = vmatpush.bf16.msra.mxu0 %v239
    %275 = vmatpush.bf16.msra.mxu0 %v238
    %276 = vmatpush.bf16.msra.mxu0 %v237
    %277 = vmatmul.bf16.gmra.mxu0 %v135
    %v278 = vpop.f32.mrf.mxu0
    %v279 = vadd.f32 %v171, %v278
    %v280 = vpop.f32.mrf.mxu0
    %281 = vdwg.mxu0
    %282 = vmatpush.bf16.msra.mxu0 %v252
    %283 = vmatpush.bf16.msra.mxu0 %v251
    %284 = vmatpush.bf16.msra.mxu0 %v250
    %285 = vmatpush.bf16.msra.mxu0 %v249
    %286 = vmatpush.bf16.msra.mxu0 %v248
    %287 = vmatpush.bf16.msra.mxu0 %v247
    %288 = vmatpush.bf16.msra.mxu0 %v246
    %289 = vmatpush.bf16.msra.mxu0 %v245
    %290 = vmatmul.bf16.gmra.mxu0 %v136
    %v291 = vpop.f32.mrf.mxu0
    %v292 = vadd.f32 %v279, %v291
    %v293 = vpop.f32.mrf.mxu0
    %294 = vdwg.mxu0
    %v295 = vmax.f32 %v292, 0.0
    %v296 = vpack.c.bf16 %v295, %v295
    %v297 = vld [vmem:[%s5] sm:$0xf]
    %v298 = vld [vmem:[%s5 + $0x4] sm:$0xf]
    %v299 = vld [vmem:[%s5 + $0x8] sm:$0xf]
    %v300 = vld [vmem:[%s5 + $0xc] sm:$0xf]
    %v301 = vld [vmem:[%s5 + $0x10] sm:$0xf]
    %v302 = vld [vmem:[%s5 + $0x14] sm:$0xf]
    %v303 = vld [vmem:[%s5 + $0x18] sm:$0xf]
    %v304 = vld [vmem:[%s5 + $0x1c] sm:$0xf]
    %v305 = vld [vmem:[%s5 + $0x20] sm:$0xf]
    %v306 = vld [vmem:[%s5 + $0x24] sm:$0xf]
    %v307 = vld [vmem:[%s5 + $0x28] sm:$0xf]
    %v308 = vld [vmem:[%s5 + $0x2c] sm:$0xf]
    %v309 = vld [vmem:[%s5 + $0x30] sm:$0xf]
    %v310 = vld [vmem:[%s5 + $0x34] sm:$0xf]
    %v311 = vld [vmem:[%s5 + $0x38] sm:$0xf]
    %v312 = vld [vmem:[%s5 + $0x3c] sm:$0xf]
    %v313 = vld [vmem:[%s6] sm:$0x1]
    %v315 = vperm.slane %v313, 0
    %v333 = vunpack.c.l.b16 %v297
    %v334 = vunpack.c.l.b16 %v298
    %v335 = vunpack.c.l.b16 %v299
    %v336 = vunpack.c.l.b16 %v300
    %v337 = vunpack.c.l.b16 %v301
    %v338 = vunpack.c.l.b16 %v302
    %v339 = vunpack.c.l.b16 %v303
    %v340 = vunpack.c.l.b16 %v304
    %v341 = vunpack.c.l.b16 %v305
    %v342 = vunpack.c.l.b16 %v306
    %v343 = vunpack.c.l.b16 %v307
    %v344 = vunpack.c.l.b16 %v308
    %v345 = vunpack.c.l.b16 %v309
    %v346 = vunpack.c.l.b16 %v310
    %v347 = vunpack.c.l.b16 %v311
    %v348 = vunpack.c.l.b16 %v312
    %v349 = vpack.c.b16 %v334, %v333
    %v350 = vpack.c.b16 %v336, %v335
    %v351 = vpack.c.b16 %v338, %v337
    %v352 = vpack.c.b16 %v340, %v339
    %v353 = vpack.c.b16 %v342, %v341
    %v354 = vpack.c.b16 %v344, %v343
    %v355 = vpack.c.b16 %v346, %v345
    %v356 = vpack.c.b16 %v348, %v347
    %365 = vmatpush.bf16.msra.mxu0 %v356
    %366 = vmatpush.bf16.msra.mxu0 %v355
    %367 = vmatpush.bf16.msra.mxu0 %v354
    %368 = vmatpush.bf16.msra.mxu0 %v353
    %369 = vmatpush.bf16.msra.mxu0 %v352
    %370 = vmatpush.bf16.msra.mxu0 %v351
    %371 = vmatpush.bf16.msra.mxu0 %v350
    %372 = vmatpush.bf16.msra.mxu0 %v349
    %373 = vmatmul.bf16.gmra.mxu0 %v296
    %v374 = vpop.f32.mrf.mxu0
    %v375 = vadd.f32 %v315, %v374
    %v376 = vpop.f32.mrf.mxu0
    %377 = vdwg.mxu0
    %v378 = vmax.f32 %v375, 0.0
    %v379 = vpack.c.bf16 %v378, %v378
    %v380 = vld [vmem:[%s7] sm:$0xf]
    %v381 = vld [vmem:[%s7 + $0x4] sm:$0xf]
    %v382 = vld [vmem:[%s7 + $0x8] sm:$0xf]
    %v383 = vld [vmem:[%s7 + $0xc] sm:$0xf]
    %v384 = vld [vmem:[%s7 + $0x10] sm:$0xf]
    %v385 = vld [vmem:[%s7 + $0x14] sm:$0xf]
    %v386 = vld [vmem:[%s7 + $0x18] sm:$0xf]
    %v387 = vld [vmem:[%s7 + $0x1c] sm:$0xf]
    %v388 = vld [vmem:[%s8] sm:$0x1]
    %v390 = vperm.slane %v388, 0
    %v400 = vunpack.c.l.b16 %v380
    %v401 = vunpack.c.l.b16 %v381
    %v402 = vunpack.c.l.b16 %v382
    %v403 = vunpack.c.l.b16 %v383
    %v404 = vunpack.c.l.b16 %v384
    %v405 = vunpack.c.l.b16 %v385
    %v406 = vunpack.c.l.b16 %v386
    %v407 = vunpack.c.l.b16 %v387
    %v408 = vpack.c.b16 %v401, %v400
    %v409 = vpack.c.b16 %v403, %v402
    %v410 = vpack.c.b16 %v405, %v404
    %v411 = vpack.c.b16 %v407, %v406
    %vm416 = vcmask 523264
    %v418 = vsel %vm416, %v379, 0
    %420 = vmatpush.bf16.msra.mxu0 0
    %421 = vmatpush.bf16.msra.mxu0 0
    %422 = vmatpush.bf16.msra.mxu0 0
    %423 = vmatpush.bf16.msra.mxu0 0
    %424 = vmatpush.bf16.msra.mxu0 %v411
    %425 = vmatpush.bf16.msra.mxu0 %v410
    %426 = vmatpush.bf16.msra.mxu0 %v409
    %427 = vmatpush.bf16.msra.mxu0 %v408
    %428 = vmatmul.bf16.gmra.mxu0 %v418
    %v429 = vpop.f32.mrf.mxu0
    %v430 = vadd.f32 %v390, %v429
    %v431 = vpop.f32.mrf.mxu0
    %432 = vdwg.mxu0
    %v433 = vmax.f32 %v430, 0.0
    %v434 = vpack.c.bf16 %v433, %v433
    %v435 = vld [vmem:[%s9] sm:$0xf]
    %vm436 = vcmask 261120
    %v438 = vsel %vm436, %v435, 0
    %v441 = vsel %vm436, %v434, 0
    %443 = vmatpush.bf16.xpose.msra.mxu0 0
    %444 = vmatpush.bf16.xpose.msra.mxu0 0
    %445 = vmatpush.bf16.xpose.msra.mxu0 0
    %446 = vmatpush.bf16.xpose.msra.mxu0 0
    %447 = vmatpush.bf16.xpose.msra.mxu0 0
    %448 = vmatpush.bf16.xpose.msra.mxu0 0
    %449 = vmatpush.bf16.xpose.msra.mxu0 0
    %450 = vmatpush.bf16.xpose.msra.mxu0 %v441
    %451 = vmatmul.bf16.gmra.mxu0 %v438
    %v452 = vpop.f32.mrf.mxu0
    %v453 = vadd.f32 0.0, %v452
    %v454 = vpop.f32.mrf.mxu0
    %455 = vdwg.mxu0
    %v456 = vld [vmem:[#allocation2] sm:$0x1]
    %458 = vset.pattern.permute.xlu0 0
    %459 = vperm.xlu0 %458, %v456
    %v460 = vpop.permute.xlu0 %459
    %v462 = vperm.slane %v460, 0
    %v463 = vadd.f32 %v453, %v462
    %v464 = vsub.f32 0.0, %v463
    %v465 = vmul.f32 %v464, 1.442695
    %v466 = vpow.pop %v465
    %v467 = vadd.f32 %v466, 1.0
    %v468 = vrcp.pop %v467
    %vm469 = vcmask 57344
    %470 = vst.msk [vmem:[#allocation6] sm:$0x1] %vm469, %v468
    // Predicated region
    $region50: #{tpu_custom_call.1} parent=1 // pred_check
      _
    $region51: #{tpu_custom_call.1} parent=1 // pred_check_branch
      %472 = sbr.rel (0) target = $region53
    $region52: #{tpu_custom_call.1} parent=1 // pred_region
      %474 = vsyncadd [#allocation5], 0
      %s476 = sshll.u32 [#allocation6], 4
      %s477 = int_to_ptr.vmem [resolvable:$true] %s476
      %s478 = sshll.u32 %s11, 4
      %s479 = int_to_ptr.hbm [resolvable:$true] %s478
      %481 = dma.vmem_to_hbm [thread:$0]  %s477, 16, %s479, [#allocation5]
    $region53: #{tpu_custom_call.1} parent=1 // pred_fallthru
      _
    // Predicated region
    $region54: #{tpu_custom_call.1} parent=1 // pred_check
      _
    $region55: #{tpu_custom_call.1} parent=1 // pred_check_branch
      %483 = sbr.rel (0) target = $region57
    $region56: #{tpu_custom_call.1} parent=1 // pred_region
      %485 = dma.done [#allocation5], 16
    $region57: #{tpu_custom_call.1} parent=1 // pred_fallthru
      _
    %486 = vsyncpa [#allocation4], 1
    %487 = vsyncpa [#allocation5], 1

</llo_original>
